<compile_context>
chip_gen: v6e
topology: v6e:2x2x1
jax: 0.10.0
libtpu: 0.0.40
codegen_flags: <defaults>
</compile_context>

<pallas_src>
import functools

import numpy as np
import jax
import jax.numpy as jnp
from jax import lax
from jax.experimental import pallas as pl
from jax.experimental.pallas import tpu as pltpu


# ---------------------------------------------------------------------------
# Tile-size helpers
# ---------------------------------------------------------------------------
def _pick_tile(n, target=512):
    """Largest multiple-of-128 tile <= target that divides n, else n itself."""
    if n <= target:
        return n
    best = None
    t = 128
    while t <= target:
        if n % t == 0:
            best = t
        t += 128
    return best if best is not None else n


def _pick_row_tile(n, d, elem_bytes=2, budget=32 << 20):
    """Row tile for the fused logits kernel.

    Picks a multiple of 128 dividing n such that
      resident xn (double-buffer upper bound) + sim tile + 2 output buffers
    stays within `budget` bytes of VMEM.  Small / odd N -> a single tile.
    """
    if n % 128 != 0 or n <= 128:
        return n
    resident = 2 * n * d * elem_bytes
    best = None
    for tm in range(128, 513, 128):
        if n % tm:
            continue
        need = resident + 4 * tm * n + 2 * 4 * tm * (n - 1)
        if need <= budget:
            best = tm
    return best if best is not None else 128


# ---------------------------------------------------------------------------
# Pass 1: row L2 normalization (+ fold sqrt(1/temperature)).  Memory bound.
# ---------------------------------------------------------------------------
def _normalize_kernel(x_ref, xn_ref, *, scale):
    x = x_ref[...].astype(jnp.float32)                          # [TM, D]
    ss = jnp.sum(x * x, axis=1, keepdims=True)                  # [TM, 1]
    # F.normalize(dim=1): x / max(||x||_2, 1e-12) == x * min(rsqrt(ss), 1e12)
    inv = jnp.minimum(lax.rsqrt(ss), 1e12)                      # EUP rsqrt
    xn_ref[...] = (x * (inv * scale)).astype(xn_ref.dtype)


def _normalize(features, scale, out_dtype):
    N, D = features.shape
    tm = _pick_tile(N)
    return pl.pallas_call(
        functools.partial(_normalize_kernel, scale=float(scale)),
        out_shape=jax.ShapeDtypeStruct((N, D), out_dtype),
        grid=(N // tm,),
        in_specs=[pl.BlockSpec((tm, D), lambda i: (i, 0))],
        out_specs=pl.BlockSpec((tm, D), lambda i: (i, 0)),
        compiler_params=pltpu.CompilerParams(
            dimension_semantics=("parallel",)),
    )(features)


# ---------------------------------------------------------------------------
# Pass 2: fused similarity matmul + positive/negative reordering.
#
# For row i with class c = i % batch and view v = i // batch the torch module
# produces, in order:
#   positives: sim[i, c + k*batch] for k != v (increasing k)      -> n_views-1
#   negatives: sim[i, j] for j % batch != c   (increasing j)      -> n_views*(batch-1)
# i.e. per view-block of width `batch`, delete column c (it is the positive)
# and keep the rest in order.  Deleting one column is a shifted select:
#   out[:, q] = blk[:, q]   if q <  c
#             = blk[:, q+1] if q >= c
# which needs no gather at all.
# ---------------------------------------------------------------------------
def _fused_logits_kernel(rows_ref, xn_ref, out_ref, *, batch, n_views):
    tm = rows_ref.shape[0]
    rows = rows_ref[...]                                         # [TM, D]
    cols = xn_ref[...]                                           # [N,  D]
    # Contract the last dim of both operands: no [D, N] transpose materialized.
    sim = lax.dot_general(
        rows, cols,
        dimension_numbers=(((1,), (1,)), ((), ())),
        preferred_element_type=jnp.float32)                      # [TM, N] f32

    row0 = pl.program_id(0) * tm
    ridx = row0 + lax.broadcasted_iota(jnp.int32, (tm, 1), 0)    # global row idx
    c = ridx % batch                                             # positive column in block
    v = ridx // batch                                            # own view/block index

    onehot = lax.broadcasted_iota(jnp.int32, (tm, batch), 1) == c        # [TM, batch]
    if batch > 1:
        keep_lo = lax.broadcasted_iota(jnp.int32, (tm, batch - 1), 1) < c  # [TM, batch-1]

    pos_cols = []
    neg_blocks = []
    for k in range(n_views):
        blk = sim[:, k * batch:(k + 1) * batch]                  # [TM, batch]
        # positive of block k: the (to-be-deleted) column c, extracted with a
        # masked lane reduction (XLU) instead of a gather.
        pos_cols.append(
            jnp.sum(jnp.where(onehot, blk, 0.0), axis=1, keepdims=True))
        if batch > 1:
            neg_blocks.append(
                jnp.where(keep_lo, blk[:, :batch - 1], blk[:, 1:]))

    pieces = []
    if n_views > 1:
        pos_all = jnp.concatenate(pos_cols, axis=1)              # [TM, n_views]
        # Drop the self-similarity entry (block k == v) with the same trick.
        keep_pos = lax.broadcasted_iota(jnp.int32, (tm, n_views - 1), 1) < v
        pieces.append(jnp.where(keep_pos, pos_all[:, :n_views - 1],
                                pos_all[:, 1:]))                 # [TM, n_views-1]
    pieces.extend(neg_blocks)
    out_ref[...] = jnp.concatenate(pieces, axis=1)               # [TM, N-1]


def _fused_logits(xn, batch, n_views, row_tile=None):
    N, D = xn.shape
    tm = _pick_row_tile(N, D, elem_bytes=xn.dtype.itemsize) \
        if row_tile is None else row_tile
    assert N % tm == 0
    return pl.pallas_call(
        functools.partial(_fused_logits_kernel, batch=batch, n_views=n_views),
        out_shape=jax.ShapeDtypeStruct((N, N - 1), jnp.float32),
        grid=(N // tm,),
        in_specs=[pl.BlockSpec((tm, D), lambda i: (i, 0)),   # pipelined row tile
                  pl.BlockSpec((N, D), lambda i: (0, 0))],   # resident full xn
        out_specs=pl.BlockSpec((tm, N - 1), lambda i: (i, 0)),
        compiler_params=pltpu.CompilerParams(
            dimension_semantics=("parallel",),
            vmem_limit_bytes=64 << 20),
    )(xn, xn)


# ---------------------------------------------------------------------------
# Public forward
# ---------------------------------------------------------------------------
def infonce_forward(features, n_views, temperature=1.0,
                    matmul_dtype=jnp.bfloat16, row_tile=None):
    """JAX/Pallas equivalent of INFONCE.forward(features)."""
    assert temperature > 0.0, "temperature must be positive"
    N, _ = features.shape
    assert N % n_views == 0
    batch = N // n_views
    # Fold 1/sqrt(T) into the normalized rows so sim = (x@x^T)/T with no
    # O(N^2) elementwise scale on the output tiles.
    scale = 1.0 / float(np.sqrt(float(temperature)))
    xn = _normalize(features, scale, matmul_dtype)               # [N, D]
    logits = _fused_logits(xn, batch, n_views, row_tile=row_tile)  # [N, N-1]
    # TODO(synk): torch returns int64 ("long") labels; JAX default is int32.
    labels = jnp.zeros((N,), dtype=jnp.int32)
    return logits, labels


# ---------------------------------------------------------------------------
# Pure-JAX reference mirroring the PyTorch module, for verification.
# ---------------------------------------------------------------------------
def _infonce_reference(features, n_views, temperature=1.0):
    N = features.shape[0]
    batch = N // n_views
    cls = jnp.arange(N) % batch
    lbl = (cls[None, :] == cls[:, None]).astype(jnp.float32)
    xn = features / jnp.maximum(
        jnp.sqrt(jnp.sum(features * features, axis=1, keepdims=True)), 1e-12)
    sim = xn @ xn.T
    eye = jnp.eye(N, dtype=bool)
    lbl_nd = lbl[~eye].reshape(N, N - 1)
    sim_nd = sim[~eye].reshape(N, N - 1)
    pos = sim_nd[lbl_nd.astype(bool)].reshape(N, -1)
    neg = sim_nd[~lbl_nd.astype(bool)].reshape(N, -1)
    logits = jnp.concatenate([pos, neg], axis=1) / temperature
    labels = jnp.zeros((N,), dtype=jnp.int32)
    return logits, labels


if __name__ == "__main__":
    # --- small config matching the module's intended use ---------------------
    n_views = 2
    batch = 4
    feat_dim = 32
    temperature = 0.5
    N = n_views * batch

    key = jax.random.PRNGKey(0)
    features = jax.random.normal(key, (N, feat_dim), dtype=jnp.float32)

    ref_logits, ref_labels = _infonce_reference(features, n_views, temperature)

    # f32-operand path: tight check of kernel structure / fused permutation.
    logits32, labels32 = infonce_forward(features, n_views, temperature,
                                         matmul_dtype=jnp.float32)
    logits32 = jax.block_until_ready(logits32)
    np.testing.assert_allclose(np.asarray(logits32), np.asarray(ref_logits),
                               rtol=1e-5, atol=1e-5)

    # Default bf16-operand / f32-accumulate path (full-rate MXU on v6e/v7x).
    logits, labels = infonce_forward(features, n_views, temperature)
    logits = jax.block_until_ready(logits)
    labels = jax.block_until_ready(labels)
    assert logits.shape == (N, N - 1), logits.shape
    assert labels.shape == (N,), labels.shape
    np.testing.assert_allclose(np.asarray(logits), np.asarray(ref_logits),
                               rtol=2e-2, atol=2e-2)
    np.testing.assert_array_equal(np.asarray(labels), np.asarray(ref_labels))

    # --- multi-row-tile path (grid > 1) exercised with a forced row_tile -----
    n_views2, batch2, d2, temp2 = 2, 128, 64, 0.07
    N2 = n_views2 * batch2
    feats2 = jax.random.normal(jax.random.PRNGKey(1), (N2, d2), jnp.float32)
    ref2, _ = _infonce_reference(feats2, n_views2, temp2)
    got2, _ = infonce_forward(feats2, n_views2, temp2,
                              matmul_dtype=jnp.float32, row_tile=128)
    got2 = jax.block_until_ready(got2)
    np.testing.assert_allclose(np.asarray(got2), np.asarray(ref2),
                               rtol=1e-4, atol=1e-4)

    print("KERNEL_OK")
</pallas_src>

<mosaic_0001>
module attributes {stable_mosaic.version = 11 : i64} {
  func.func @_normalize_kernel(%arg0: i32, %arg1: memref<8x32xf32, #tpu.memory_space<vmem>>, %arg2: memref<8x32xf32, #tpu.memory_space<vmem>>) attributes {dimension_semantics = [#tpu.dimension_semantics<parallel>], iteration_bounds = array<i64: 1>, scalar_prefetch = 0 : i64, scratch_operands = 0 : i64, tpu.core_type = #tpu.core_type<tc>, window_params = [{transform_indices = @transform_0, window_bounds = array<i64: 8, 32>}, {transform_indices = @transform_1, window_bounds = array<i64: 8, 32>}]} {
    %c0 = arith.constant 0 : index
    %c0_0 = arith.constant 0 : index
    %0 = vector.load %arg1[%c0, %c0_0] : memref<8x32xf32, #tpu.memory_space<vmem>>, vector<8x32xf32>
    %1 = arith.mulf %0, %0 : vector<8x32xf32>
    %cst = arith.constant dense<0.000000e+00> : vector<8xf32>
    %2 = vector.multi_reduction <add>, %1, %cst [1] : vector<8x32xf32> to vector<8xf32>
    %3 = vector.shape_cast %2 : vector<8xf32> to vector<8x1xf32>
    %4 = math.rsqrt %3 : vector<8x1xf32>
    %cst_1 = arith.constant 9.99999995E+11 : f32
    %5 = vector.broadcast %cst_1 : f32 to vector<8x1xf32>
    %6 = arith.minimumf %4, %5 : vector<8x1xf32>
    %cst_2 = arith.constant 1.41421354 : f32
    %7 = vector.broadcast %cst_2 : f32 to vector<8x1xf32>
    %8 = arith.mulf %6, %7 : vector<8x1xf32>
    %9 = vector.broadcast %8 : vector<8x1xf32> to vector<8x32xf32>
    %10 = arith.mulf %0, %9 : vector<8x32xf32>
    %c0_3 = arith.constant 0 : index
    %c0_4 = arith.constant 0 : index
    %11 = vector.load %arg2[%c0_3, %c0_4] : memref<8x32xf32, #tpu.memory_space<vmem>>, vector<8x32xf32>
    tpu.vector_store %arg2[%c0_3, %c0_4], %10 {strides = array<i32>} : memref<8x32xf32, #tpu.memory_space<vmem>>, vector<8x32xf32>,
    return
  }
  func.func @transform_0(%arg0: i32) -> (i32, i32) {
    %c0_i32 = arith.constant 0 : i32
    %c0_i32_0 = arith.constant 0 : i32
    return %arg0, %c0_i32 : i32, i32
  }
  func.func @transform_1(%arg0: i32) -> (i32, i32) {
    %c0_i32 = arith.constant 0 : i32
    %c0_i32_0 = arith.constant 0 : i32
    return %arg0, %c0_i32 : i32, i32
  }
}

</mosaic_0001>

<llo_original>
// kernel: tpu_custom_call.1
$region0: #{tpu_custom_call.1}
  #allocation0 [shape = 'u32[]', space=smem, size = 0x4, offset = 0x4, fixed_abs, tag = 'smem constant byte address 0x4 - core index']
  #allocation1 [shape = 'u32[144,128]{1,0:T(1,128)}', space=vmem, size = 0x12000, scoped, tag = 'internal scratch']
  %s0 = inlined_call_operand.hbm [shape: f32[8,32], index: 0, kind: input, shape index: {}]
  %s1 = inlined_call_operand.hbm [shape: f32[8,32], index: 1, kind: output, shape index: {}]
  %s2 = sld [smem:[#allocation0]]
  $region18: #{tpu_custom_call.1} parent=0
    _
  %s4 = ssub.s32 1, %s2
  %s5 = scalar_select 0, %s4, %s2
  $region1: #{tpu_custom_call.1} parent=0
    #allocation2 [shape = 'u8[4096]{0}', space=vmem, size = 0x1000, scoped, tag = 'input window, operand 0, single buffered']
    #allocation3 [shape = 's32[1]{0}', space=sflag, size = 0x4, scoped, tag = 'scoped memory for tpu_custom_call.1']
    #allocation4 [shape = 's32[1]{0}', space=sflag, size = 0x4, scoped, tag = 'scoped memory for tpu_custom_call.1']
    #allocation5 [shape = 'u8[4096]{0}', space=vmem, size = 0x1000, scoped, tag = 'output window, operand 0, single buffered']
    %6 = vsyncpa [#allocation3], 0
    %7 = vsyncpa [#allocation4], 0
    // Predicated region
    $region2: #{tpu_custom_call.1} parent=1 // pred_check
      _
    $region3: #{tpu_custom_call.1} parent=1 // pred_check_branch
      %9 = sbr.rel (0) target = $region5
    $region4: #{tpu_custom_call.1} parent=1 // pred_region
      %s11 = ssub.s32 128, 128
      %12 = vsyncadd [#allocation3], %s11
      %s14 = sshll.u32 [#allocation2], 4
      %s15 = int_to_ptr.vmem [resolvable:$true] %s14
      %17 = dma.hbm_to_vmem [thread:$0]  %s0, 128, %s15, [#allocation3]
    $region5: #{tpu_custom_call.1} parent=1 // pred_fallthru
      _
    // Predicated region
    $region6: #{tpu_custom_call.1} parent=1 // pred_check
      _
    $region7: #{tpu_custom_call.1} parent=1 // pred_check_branch
      %19 = sbr.rel (0) target = $region9
    $region8: #{tpu_custom_call.1} parent=1 // pred_region
      %20 = dma.done [#allocation3], 128
    $region9: #{tpu_custom_call.1} parent=1 // pred_fallthru
      _
    %v21 = vld [vmem:[#allocation2] sm:$0xff]
    %v22 = vmul.f32 %v21, %v21
    %vm23 = vcmask 261120
    %v24 = vsel %vm23, %v22, 0.0
    %25 = vadd.xlane.f32.xlu0 %v24
    %v26 = vpop.xlane.xlu0 %25
    %v27 = vrsqrt.pop %v26
    %v28 = vmin.f32 %v27, 1e+12
    %v29 = vmul.f32 %v28, 1.4142135
    %v30 = vmul.f32 %v21, %v29
    %31 = vst.msk [vmem:[#allocation5] sm:$0xff] %vm23, %v30
    // Predicated region
    $region10: #{tpu_custom_call.1} parent=1 // pred_check
      _
    $region11: #{tpu_custom_call.1} parent=1 // pred_check_branch
      %33 = sbr.rel (0) target = $region13
    $region12: #{tpu_custom_call.1} parent=1 // pred_region
      %s35 = ssub.s32 128, 128
      %36 = vsyncadd [#allocation4], %s35
      %s38 = sshll.u32 [#allocation5], 4
      %s39 = int_to_ptr.vmem [resolvable:$true] %s38
      %41 = dma.vmem_to_hbm [thread:$0]  %s39, 128, %s1, [#allocation4]
    $region13: #{tpu_custom_call.1} parent=1 // pred_fallthru
      _
    // Predicated region
    $region14: #{tpu_custom_call.1} parent=1 // pred_check
      _
    $region15: #{tpu_custom_call.1} parent=1 // pred_check_branch
      %43 = sbr.rel (0) target = $region17
    $region16: #{tpu_custom_call.1} parent=1 // pred_region
      %44 = dma.done [#allocation4], 128
    $region17: #{tpu_custom_call.1} parent=1 // pred_fallthru
      _
    %45 = vsyncpa [#allocation3], 1
    %46 = vsyncpa [#allocation4], 1

</llo_original>
